<compile_context>
chip_gen: v6e
topology: v6e:2x2x1
jax: 0.10.0
libtpu: 0.0.40
codegen_flags: <defaults>
</compile_context>

<pallas_src>
import functools

import jax
import jax.numpy as jnp
from jax.experimental import pallas as pl
from jax.experimental.pallas import tpu as pltpu


def _mv_distill_kl_kernel(a_ref, b_ref, o_ref, *, inv_t, view_num, c, tb2, b2,
                          mask_rows, lane_views):
    # a_ref: (tb2, view_num*C) tile of lane-reshaped f1   (lane_views=True)
    #        (tb2*view_num, C) tile of f1                 (lane_views=False)
    # b_ref: (tb2, C)           tile of features_2_logits (never repeated)
    # o_ref: (1, 8, 128)        per-tile partial sum slab (element [0,0,0] is used)
    if mask_rows:
        row_ids = (jax.lax.broadcasted_iota(jnp.int32, (tb2, c), 0)
                   + pl.program_id(0) * tb2)
        valid = row_ids < b2

    def masked(x):
        # Single mask layer: zeroed padded rows make q == p and log_q == log_p, so
        # their (q - p) * (log_q - log_p) contribution is exactly 0.
        return jnp.where(valid, x, 0.0) if mask_rows else x

    # ---- f2 tile: softmax / log_softmax computed once, exp reused ------------------
    b = masked(b_ref[...].astype(jnp.float32) * inv_t)
    b_ctr = b - jnp.max(b, axis=-1, keepdims=True)
    eb = jnp.exp(b_ctr)
    zb = jnp.sum(eb, axis=-1, keepdims=True)
    q = eb * pl.reciprocal(zb, approx=True)            # softmax(new_f2 / T)
    log_q = b_ctr - jnp.log(zb)                        # log_softmax(new_f2 / T)

    # ---- f1 views: row-aligned with the f2 tile -------------------------------------
    kl_acc = None
    for k in range(view_num):                          # static & small (number of views)
        if lane_views:
            a_raw = a_ref[:, k * c:(k + 1) * c]        # aligned lane slice (C % 128 == 0)
        else:
            a_raw = a_ref[pl.ds(k, tb2, stride=view_num), :]   # sublane-strided fallback
        a = masked(a_raw.astype(jnp.float32) * inv_t)
        a_ctr = a - jnp.max(a, axis=-1, keepdims=True)
        ea = jnp.exp(a_ctr)
        za = jnp.sum(ea, axis=-1, keepdims=True)
        p = ea * pl.reciprocal(za, approx=True)        # softmax(f1 / T)
        log_p = a_ctr - jnp.log(za)                    # log_softmax(f1 / T)
        # Symmetric KL: q*(log_q-log_p) + p*(log_p-log_q) == (q - p) * (log_q - log_p)
        kl = (q - p) * (log_q - log_p)
        kl_acc = kl if kl_acc is None else kl_acc + kl

    total = jnp.sum(kl_acc)                            # one XLU reduction per grid step
    o_ref[...] = jnp.full((1, 8, 128), total, dtype=jnp.float32)


def _choose_tb2(b2, c, view_num, sub):
    """f2 rows per grid step.  Sized against f32 widths (the in-kernel compute dtype)
    so the double-buffered input set plus the f32 temporaries stay inside the 48 MiB
    scoped-VMEM limit requested below, while tiles are big enough (several MiB/step)
    to keep the DMA pipeline near the HBM roofline."""
    budget_bytes = 6 * 1024 * 1024
    rows = budget_bytes // max(1, (view_num + 1) * c * 4)
    if rows >= b2:
        return b2                         # single full block (block dims == array dims)
    return max(sub, (rows // sub) * sub)  # keep the sublane dim packed-tile aligned


def mv_distill_kl(features_1_logits, features_2_logits, features_1=None,
                  features_2=None, *, view_num, T=4.0, tb2=None):
    """JAX wrapper mirroring MVDistillKL.forward (features_1/features_2 unused)."""
    b1, c = features_1_logits.shape
    b2, c2 = features_2_logits.shape
    assert c == c2, "class dims must match"
    assert b1 == view_num * b2, "batch of f1 must be view_num * batch of f2"

    itemsize = features_1_logits.dtype.itemsize
    sub = max(8, 32 // itemsize)          # packed sublane tile: 8 f32 / 16 bf16 / 32 int8

    if tb2 is None:
        tb2 = _choose_tb2(b2, c, view_num, sub)
    tb2 = int(min(tb2, b2))
    if tb2 < b2:
        assert tb2 % sub == 0, (
            "f2 row tile must be a multiple of the packed sublane tile "
            f"({sub} for dtype {features_1_logits.dtype}) or the full batch")
    num_tiles = int(pl.cdiv(b2, tb2))
    mask_rows = (b2 % tb2) != 0

    lane_views = (c % 128 == 0)
    if lane_views:
        # Free row-major metadata reshape: row g of f1_in holds the view_num views of
        # group g concatenated along lanes -> view k is a static, aligned lane slice.
        f1_in = features_1_logits.reshape(b2, view_num * c)
        f1_spec = pl.BlockSpec((tb2, view_num * c), lambda i: (i, 0))
    else:
        f1_in = features_1_logits
        f1_spec = pl.BlockSpec((tb2 * view_num, c), lambda i: (i, 0))

    kernel = functools.partial(
        _mv_distill_kl_kernel,
        inv_t=1.0 / float(T),
        view_num=int(view_num),
        c=int(c),
        tb2=tb2,
        b2=int(b2),
        mask_rows=mask_rows,
        lane_views=lane_views,
    )

    cost = pl.CostEstimate(
        flops=int(10 * (b1 + b2) * c),
        transcendentals=int((b1 + b2) * (c + 2)),
        bytes_accessed=int((b1 + b2) * c * itemsize + num_tiles * 8 * 128 * 4),
    )

    partials = pl.pallas_call(
        kernel,
        out_shape=jax.ShapeDtypeStruct((num_tiles, 8, 128), jnp.float32),
        grid=(num_tiles,),
        in_specs=[
            f1_spec,                                      # f1: view_num views per f2 row
            pl.BlockSpec((tb2, c), lambda i: (i, 0)),     # f2: tb2 rows / step (no repeat)
        ],
        out_specs=pl.BlockSpec((1, 8, 128), lambda i: (i, 0, 0)),  # per-tile partial
        compiler_params=pltpu.CompilerParams(
            dimension_semantics=("parallel",),            # megacore-shards the grid on v7x
            vmem_limit_bytes=48 * 1024 * 1024,
        ),
        cost_estimate=cost,
    )(f1_in, features_2_logits)

    scale = 0.5 * float(T) * float(T) / float(b1)
    return jnp.sum(partials[:, 0, 0]) * scale


def _reference(f1_logits, f2_logits, view_num, T=4.0):
    """Pure-JAX reference for a sanity check."""
    new_f2 = jnp.repeat(f2_logits, view_num, axis=0)

    def distill_kl(a, b):
        log_p = jax.nn.log_softmax(a / T, axis=1)
        q = jax.nn.softmax(b / T, axis=1)
        log_q = jax.nn.log_softmax(b / T, axis=1)
        return jnp.sum(q * (log_q - log_p)) * (T ** 2) / a.shape[0]

    return 0.5 * (distill_kl(f1_logits, new_f2) + distill_kl(new_f2, f1_logits))


if __name__ == "__main__":
    view_num = 2
    T = 4.0
    batch_2 = 12                      # base batch (features_2_logits)
    batch_1 = batch_2 * view_num      # multi-view batch (features_1_logits)
    num_classes = 128
    hidden = 32

    key = jax.random.PRNGKey(0)
    k1, k2, k3, k4 = jax.random.split(key, 4)
    features_1_logits = jax.random.normal(k1, (batch_1, num_classes), jnp.float32)
    features_2_logits = jax.random.normal(k2, (batch_2, num_classes), jnp.float32)
    features_1 = jax.random.normal(k3, (batch_1, hidden), jnp.float32)  # unused by forward
    features_2 = jax.random.normal(k4, (batch_2, hidden), jnp.float32)  # unused by forward

    ref = _reference(features_1_logits, features_2_logits, view_num, T)

    # Default tiling: single full tile, lane-slice view path, masking elided.
    loss = mv_distill_kl(features_1_logits, features_2_logits, features_1,
                         features_2, view_num=view_num, T=T)
    loss = jax.block_until_ready(loss)
    assert jnp.allclose(loss, ref, atol=2e-3, rtol=2e-3), (loss, ref)

    # tb2=8: two grid steps (12 = 8 + 4) with a masked remainder tile and parallel
    # per-tile partial sums, exercising the padding + multi-tile path.
    loss_tiled = mv_distill_kl(features_1_logits, features_2_logits, features_1,
                               features_2, view_num=view_num, T=T, tb2=8)
    loss_tiled = jax.block_until_ready(loss_tiled)
    assert jnp.allclose(loss_tiled, ref, atol=2e-3, rtol=2e-3), (loss_tiled, ref)

    print("KERNEL_OK")
</pallas_src>

<mosaic_0001>
module attributes {stable_mosaic.version = 11 : i64} {
  func.func @_mv_distill_kl_kernel(%arg0: i32, %arg1: memref<12x256xf32, #tpu.memory_space<vmem>>, %arg2: memref<12x128xf32, #tpu.memory_space<vmem>>, %arg3: memref<1x8x128xf32, #tpu.memory_space<vmem>>) attributes {dimension_semantics = [#tpu.dimension_semantics<parallel>], iteration_bounds = array<i64: 1>, scalar_prefetch = 0 : i64, scratch_operands = 0 : i64, tpu.core_type = #tpu.core_type<tc>, window_params = [{transform_indices = @transform_0, window_bounds = array<i64: 12, 256>}, {transform_indices = @transform_1, window_bounds = array<i64: 12, 128>}, {transform_indices = @transform_2, window_bounds = array<i64: 1, 8, 128>}]} {
    %c0 = arith.constant 0 : index
    %c0_0 = arith.constant 0 : index
    %0 = vector.load %arg2[%c0, %c0_0] : memref<12x128xf32, #tpu.memory_space<vmem>>, vector<12x128xf32>
    %cst = arith.constant 2.500000e-01 : f32
    %1 = vector.broadcast %cst : f32 to vector<12x128xf32>
    %2 = arith.mulf %0, %1 : vector<12x128xf32>
    %cst_1 = arith.constant dense<0xFF800000> : vector<12xf32>
    %3 = vector.multi_reduction <maximumf>, %2, %cst_1 [1] : vector<12x128xf32> to vector<12xf32>
    %4 = vector.shape_cast %3 : vector<12xf32> to vector<12x1xf32>
    %5 = vector.broadcast %4 : vector<12x1xf32> to vector<12x128xf32>
    %6 = arith.subf %2, %5 : vector<12x128xf32>
    %7 = math.exp %6 : vector<12x128xf32>
    %cst_2 = arith.constant dense<0.000000e+00> : vector<12xf32>
    %8 = vector.multi_reduction <add>, %7, %cst_2 [1] : vector<12x128xf32> to vector<12xf32>
    %9 = vector.shape_cast %8 : vector<12xf32> to vector<12x1xf32>
    %10 = tpu.reciprocal %9 {approx = true} : vector<12x1xf32> -> vector<12x1xf32>
    %11 = vector.broadcast %10 : vector<12x1xf32> to vector<12x128xf32>
    %12 = arith.mulf %7, %11 : vector<12x128xf32>
    %13 = math.log %9 : vector<12x1xf32>
    %14 = vector.broadcast %13 : vector<12x1xf32> to vector<12x128xf32>
    %15 = arith.subf %6, %14 : vector<12x128xf32>
    %c0_3 = arith.constant 0 : index
    %c0_4 = arith.constant 0 : index
    %16 = vector.load %arg1[%c0_3, %c0_4] : memref<12x256xf32, #tpu.memory_space<vmem>>, vector<12x128xf32>
    %cst_5 = arith.constant 2.500000e-01 : f32
    %17 = vector.broadcast %cst_5 : f32 to vector<12x128xf32>
    %18 = arith.mulf %16, %17 : vector<12x128xf32>
    %cst_6 = arith.constant dense<0xFF800000> : vector<12xf32>
    %19 = vector.multi_reduction <maximumf>, %18, %cst_6 [1] : vector<12x128xf32> to vector<12xf32>
    %20 = vector.shape_cast %19 : vector<12xf32> to vector<12x1xf32>
    %21 = vector.broadcast %20 : vector<12x1xf32> to vector<12x128xf32>
    %22 = arith.subf %18, %21 : vector<12x128xf32>
    %23 = math.exp %22 : vector<12x128xf32>
    %cst_7 = arith.constant dense<0.000000e+00> : vector<12xf32>
    %24 = vector.multi_reduction <add>, %23, %cst_7 [1] : vector<12x128xf32> to vector<12xf32>
    %25 = vector.shape_cast %24 : vector<12xf32> to vector<12x1xf32>
    %26 = tpu.reciprocal %25 {approx = true} : vector<12x1xf32> -> vector<12x1xf32>
    %27 = vector.broadcast %26 : vector<12x1xf32> to vector<12x128xf32>
    %28 = arith.mulf %23, %27 : vector<12x128xf32>
    %29 = math.log %25 : vector<12x1xf32>
    %30 = vector.broadcast %29 : vector<12x1xf32> to vector<12x128xf32>
    %31 = arith.subf %22, %30 : vector<12x128xf32>
    %32 = arith.subf %12, %28 : vector<12x128xf32>
    %33 = arith.subf %15, %31 : vector<12x128xf32>
    %34 = arith.mulf %32, %33 : vector<12x128xf32>
    %c0_8 = arith.constant 0 : index
    %c128 = arith.constant 128 : index
    %35 = vector.load %arg1[%c0_8, %c128] : memref<12x256xf32, #tpu.memory_space<vmem>>, vector<12x128xf32>
    %cst_9 = arith.constant 2.500000e-01 : f32
    %36 = vector.broadcast %cst_9 : f32 to vector<12x128xf32>
    %37 = arith.mulf %35, %36 : vector<12x128xf32>
    %cst_10 = arith.constant dense<0xFF800000> : vector<12xf32>
    %38 = vector.multi_reduction <maximumf>, %37, %cst_10 [1] : vector<12x128xf32> to vector<12xf32>
    %39 = vector.shape_cast %38 : vector<12xf32> to vector<12x1xf32>
    %40 = vector.broadcast %39 : vector<12x1xf32> to vector<12x128xf32>
    %41 = arith.subf %37, %40 : vector<12x128xf32>
    %42 = math.exp %41 : vector<12x128xf32>
    %cst_11 = arith.constant dense<0.000000e+00> : vector<12xf32>
    %43 = vector.multi_reduction <add>, %42, %cst_11 [1] : vector<12x128xf32> to vector<12xf32>
    %44 = vector.shape_cast %43 : vector<12xf32> to vector<12x1xf32>
    %45 = tpu.reciprocal %44 {approx = true} : vector<12x1xf32> -> vector<12x1xf32>
    %46 = vector.broadcast %45 : vector<12x1xf32> to vector<12x128xf32>
    %47 = arith.mulf %42, %46 : vector<12x128xf32>
    %48 = math.log %44 : vector<12x1xf32>
    %49 = vector.broadcast %48 : vector<12x1xf32> to vector<12x128xf32>
    %50 = arith.subf %41, %49 : vector<12x128xf32>
    %51 = arith.subf %12, %47 : vector<12x128xf32>
    %52 = arith.subf %15, %50 : vector<12x128xf32>
    %53 = arith.mulf %51, %52 : vector<12x128xf32>
    %54 = arith.addf %34, %53 : vector<12x128xf32>
    %55 = vector.shape_cast %54 : vector<12x128xf32> to vector<1x12x128xf32>
    %cst_12 = arith.constant dense<0.000000e+00> : vector<1xf32>
    %56 = vector.multi_reduction <add>, %55, %cst_12 [1, 2] : vector<1x12x128xf32> to vector<1xf32>
    %57 = vector.shape_cast %56 : vector<1xf32> to vector<1x1x1xf32>
    %58 = vector.extract %57[0, 0, 0] : f32 from vector<1x1x1xf32>
    %59 = vector.broadcast %58 : f32 to vector<1x8x128xf32>
    %c0_13 = arith.constant 0 : index
    %c0_14 = arith.constant 0 : index
    %c0_15 = arith.constant 0 : index
    %60 = vector.load %arg3[%c0_13, %c0_14, %c0_15] : memref<1x8x128xf32, #tpu.memory_space<vmem>>, vector<1x8x128xf32>
    tpu.vector_store %arg3[%c0_13, %c0_14, %c0_15], %59 {strides = array<i32>} : memref<1x8x128xf32, #tpu.memory_space<vmem>>, vector<1x8x128xf32>,
    return
  }
  func.func @transform_0(%arg0: i32) -> (i32, i32) {
    %c0_i32 = arith.constant 0 : i32
    %c0_i32_0 = arith.constant 0 : i32
    return %arg0, %c0_i32 : i32, i32
  }
  func.func @transform_1(%arg0: i32) -> (i32, i32) {
    %c0_i32 = arith.constant 0 : i32
    %c0_i32_0 = arith.constant 0 : i32
    return %arg0, %c0_i32 : i32, i32
  }
  func.func @transform_2(%arg0: i32) -> (i32, i32, i32) {
    %c0_i32 = arith.constant 0 : i32
    %c0_i32_0 = arith.constant 0 : i32
    %c0_i32_1 = arith.constant 0 : i32
    return %arg0, %c0_i32, %c0_i32_0 : i32, i32, i32
  }
}

</mosaic_0001>

<llo_original>
// kernel: tpu_custom_call.1
$region0: #{tpu_custom_call.1}
  #allocation0 [shape = 'u32[]', space=smem, size = 0x4, offset = 0x4, fixed_abs, tag = 'smem constant byte address 0x4 - core index']
  #allocation1 [shape = 'u32[144,128]{1,0:T(1,128)}', space=vmem, size = 0x12000, scoped, tag = 'internal scratch']
  %s0 = inlined_call_operand.hbm [shape: f32[12,256], index: 0, kind: input, shape index: {}]
  %s1 = inlined_call_operand.hbm [shape: f32[12,128], index: 1, kind: input, shape index: {}]
  %s2 = inlined_call_operand.hbm [shape: f32[1,8,128], index: 2, kind: output, shape index: {}]
  %s3 = sld [smem:[#allocation0]]
  $region26: #{tpu_custom_call.1} parent=0
    _
  %s5 = ssub.s32 1, %s3
  %s6 = scalar_select 0, %s5, %s3
  $region1: #{tpu_custom_call.1} parent=0
    #allocation2 [shape = 'u8[16384]{0}', space=vmem, size = 0x4000, scoped, tag = 'input window, operand 0, single buffered']
    #allocation3 [shape = 's32[1]{0}', space=sflag, size = 0x4, scoped, tag = 'scoped memory for tpu_custom_call.1']
    #allocation4 [shape = 's32[1]{0}', space=sflag, size = 0x4, scoped, tag = 'scoped memory for tpu_custom_call.1']
    #allocation5 [shape = 'u8[8192]{0}', space=vmem, size = 0x2000, scoped, tag = 'input window, operand 1, single buffered']
    #allocation6 [shape = 's32[1]{0}', space=sflag, size = 0x4, scoped, tag = 'scoped memory for tpu_custom_call.1']
    #allocation7 [shape = 'u8[4096]{0}', space=vmem, size = 0x1000, scoped, tag = 'output window, operand 0, single buffered']
    %7 = vsyncpa [#allocation3], 0
    %8 = vsyncpa [#allocation6], 0
    %9 = vsyncpa [#allocation4], 0
    // Predicated region
    $region2: #{tpu_custom_call.1} parent=1 // pred_check
      _
    $region3: #{tpu_custom_call.1} parent=1 // pred_check_branch
      %11 = sbr.rel (0) target = $region5
    $region4: #{tpu_custom_call.1} parent=1 // pred_region
      %s13 = ssub.s32 512, 512
      %14 = vsyncadd [#allocation3], %s13
      %s15 = sshll.u32 [#allocation2], 4
      %s16 = int_to_ptr.vmem [resolvable:$true] %s15
      %21 = dma.hbm_to_vmem [thread:$0]  %s0, 512, %s16, [#allocation3], 256, 256, 16
    $region5: #{tpu_custom_call.1} parent=1 // pred_fallthru
      _
    // Predicated region
    $region6: #{tpu_custom_call.1} parent=1 // pred_check
      _
    $region7: #{tpu_custom_call.1} parent=1 // pred_check_branch
      %23 = sbr.rel (0) target = $region9
    $region8: #{tpu_custom_call.1} parent=1 // pred_region
      %s25 = ssub.s32 256, 256
      %26 = vsyncadd [#allocation6], %s25
      %s27 = sshll.u32 [#allocation5], 4
      %s28 = int_to_ptr.vmem [resolvable:$true] %s27
      %33 = dma.hbm_to_vmem [thread:$0]  %s1, 256, %s28, [#allocation6], 128, 128, 8
    $region9: #{tpu_custom_call.1} parent=1 // pred_fallthru
      _
    // Predicated region
    $region10: #{tpu_custom_call.1} parent=1 // pred_check
      _
    $region11: #{tpu_custom_call.1} parent=1 // pred_check_branch
      %35 = sbr.rel (0) target = $region13
    $region12: #{tpu_custom_call.1} parent=1 // pred_region
      %36 = dma.done [#allocation3], 512
    $region13: #{tpu_custom_call.1} parent=1 // pred_fallthru
      _
    // Predicated region
    $region14: #{tpu_custom_call.1} parent=1 // pred_check
      _
    $region15: #{tpu_custom_call.1} parent=1 // pred_check_branch
      %38 = sbr.rel (0) target = $region17
    $region16: #{tpu_custom_call.1} parent=1 // pred_region
      %39 = dma.done [#allocation6], 256
    $region17: #{tpu_custom_call.1} parent=1 // pred_fallthru
      _
    %v40 = vld [vmem:[#allocation5] sm:$0xff]
    %v41 = vld [vmem:[#allocation5 + $0x8] sm:$0xf]
    %v42 = vmul.f32 %v40, 0.25
    %v43 = vmul.f32 %v41, 0.25
    %44 = vmax.xlane.f32.xlu0 %v42
    %v45 = vpop.xlane.xlu0 %44
    %vm46 = vcmask 1043456
    %v47 = vsel %vm46, %v43, -inf
    %48 = vmax.xlane.f32.xlu0 %v47
    %v49 = vpop.xlane.xlu0 %48
    %v50 = vsub.f32 %v42, %v45
    %v51 = vsub.f32 %v43, %v49
    %v52 = vmul.f32 %v50, 1.442695
    %v53 = vpow.pop %v52
    %v54 = vmul.f32 %v51, 1.442695
    %v55 = vpow.pop %v54
    %56 = vadd.xlane.f32.xlu0 %v53
    %v57 = vpop.xlane.xlu0 %56
    %v58 = vsel %vm46, %v55, 0.0
    %59 = vadd.xlane.f32.xlu0 %v58
    %v60 = vpop.xlane.xlu0 %59
    %v61 = vrcp.pop %v57
    %v62 = vrcp.pop %v60
    %v63 = vmul.f32 %v53, %v61
    %v64 = vmul.f32 %v55, %v62
    %v65 = vlog2.pop %v57
    %v66 = vmul.f32 %v65, 0.6931472
    %v67 = vlog2.pop %v60
    %v68 = vmul.f32 %v67, 0.6931472
    %v69 = vsub.f32 %v50, %v66
    %v70 = vsub.f32 %v51, %v68
    %v71 = vld [vmem:[#allocation2] sm:$0xff]
    %v72 = vld [vmem:[#allocation2 + $0x10] sm:$0xf]
    %v73 = vmul.f32 %v71, 0.25
    %v74 = vmul.f32 %v72, 0.25
    %75 = vmax.xlane.f32.xlu0 %v73
    %v76 = vpop.xlane.xlu0 %75
    %v77 = vsel %vm46, %v74, -inf
    %78 = vmax.xlane.f32.xlu0 %v77
    %v79 = vpop.xlane.xlu0 %78
    %v80 = vsub.f32 %v73, %v76
    %v81 = vsub.f32 %v74, %v79
    %v82 = vmul.f32 %v80, 1.442695
    %v83 = vpow.pop %v82
    %v84 = vmul.f32 %v81, 1.442695
    %v85 = vpow.pop %v84
    %86 = vadd.xlane.f32.xlu0 %v83
    %v87 = vpop.xlane.xlu0 %86
    %v88 = vsel %vm46, %v85, 0.0
    %89 = vadd.xlane.f32.xlu0 %v88
    %v90 = vpop.xlane.xlu0 %89
    %v91 = vrcp.pop %v87
    %v92 = vrcp.pop %v90
    %v93 = vmul.f32 %v83, %v91
    %v94 = vmul.f32 %v85, %v92
    %v95 = vlog2.pop %v87
    %v96 = vmul.f32 %v95, 0.6931472
    %v97 = vlog2.pop %v90
    %v98 = vmul.f32 %v97, 0.6931472
    %v99 = vsub.f32 %v80, %v96
    %v100 = vsub.f32 %v81, %v98
    %v101 = vsub.f32 %v63, %v93
    %v102 = vsub.f32 %v64, %v94
    %v103 = vsub.f32 %v69, %v99
    %v104 = vsub.f32 %v70, %v100
    %v105 = vmul.f32 %v101, %v103
    %v106 = vmul.f32 %v102, %v104
    %v107 = vld [vmem:[#allocation2 + $0x8] sm:$0xff]
    %v108 = vld [vmem:[#allocation2 + $0x18] sm:$0xf]
    %v109 = vmul.f32 %v107, 0.25
    %v110 = vmul.f32 %v108, 0.25
    %111 = vmax.xlane.f32.xlu0 %v109
    %v112 = vpop.xlane.xlu0 %111
    %v113 = vsel %vm46, %v110, -inf
    %114 = vmax.xlane.f32.xlu0 %v113
    %v115 = vpop.xlane.xlu0 %114
    %v116 = vsub.f32 %v109, %v112
    %v117 = vsub.f32 %v110, %v115
    %v118 = vmul.f32 %v116, 1.442695
    %v119 = vpow.pop %v118
    %v120 = vmul.f32 %v117, 1.442695
    %v121 = vpow.pop %v120
    %122 = vadd.xlane.f32.xlu0 %v119
    %v123 = vpop.xlane.xlu0 %122
    %v124 = vsel %vm46, %v121, 0.0
    %125 = vadd.xlane.f32.xlu0 %v124
    %v126 = vpop.xlane.xlu0 %125
    %v127 = vrcp.pop %v123
    %v128 = vrcp.pop %v126
    %v129 = vmul.f32 %v119, %v127
    %v130 = vmul.f32 %v121, %v128
    %v131 = vlog2.pop %v123
    %v132 = vmul.f32 %v131, 0.6931472
    %v133 = vlog2.pop %v126
    %v134 = vmul.f32 %v133, 0.6931472
    %v135 = vsub.f32 %v116, %v132
    %v136 = vsub.f32 %v117, %v134
    %v137 = vsub.f32 %v63, %v129
    %v138 = vsub.f32 %v64, %v130
    %v139 = vsub.f32 %v69, %v135
    %v140 = vsub.f32 %v70, %v136
    %v141 = vmul.f32 %v137, %v139
    %v142 = vmul.f32 %v138, %v140
    %v143 = vadd.f32 %v105, %v141
    %v144 = vadd.f32 %v106, %v142
    %v145 = vsel %vm46, %v144, 0.0
    %v146 = vadd.f32 %v143, %v145
    %147 = vadd.xlane.f32.xlu0 %v146
    %v148 = vpop.xlane.xlu0 %147
    %v149 = vrot.slane %v148, 4
    %v150 = vadd.f32 %v148, %v149
    %v151 = vrot.slane %v150, 2
    %v152 = vadd.f32 %v150, %v151
    %v153 = vrot.slane %v152, 1
    %v154 = vadd.f32 %v152, %v153
    %s155 = vtos %v154
    %v156 = vstv %s155
    %157 = vst [vmem:[#allocation7] sm:$0xff] %v156
    // Predicated region
    $region18: #{tpu_custom_call.1} parent=1 // pred_check
      _
    $region19: #{tpu_custom_call.1} parent=1 // pred_check_branch
      %159 = sbr.rel (0) target = $region21
    $region20: #{tpu_custom_call.1} parent=1 // pred_region
      %s161 = ssub.s32 128, 128
      %162 = vsyncadd [#allocation4], %s161
      %s164 = sshll.u32 [#allocation7], 4
      %s165 = int_to_ptr.vmem [resolvable:$true] %s164
      %167 = dma.vmem_to_hbm [thread:$0]  %s165, 128, %s2, [#allocation4]
    $region21: #{tpu_custom_call.1} parent=1 // pred_fallthru
      _
    // Predicated region
    $region22: #{tpu_custom_call.1} parent=1 // pred_check
      _
    $region23: #{tpu_custom_call.1} parent=1 // pred_check_branch
      %169 = sbr.rel (0) target = $region25
    $region24: #{tpu_custom_call.1} parent=1 // pred_region
      %170 = dma.done [#allocation4], 128
    $region25: #{tpu_custom_call.1} parent=1 // pred_fallthru
      _
    %171 = vsyncpa [#allocation3], 1
    %172 = vsyncpa [#allocation6], 1
    %173 = vsyncpa [#allocation4], 1

</llo_original>
